<compile_context>
chip_gen: v7x
topology: tpu7x:2x2x1
jax: 0.10.0
libtpu: 0.0.40
codegen_flags: <defaults>
</compile_context>

<pallas_src>
import jax
import jax.numpy as jnp
from jax import lax
from jax.experimental import pallas as pl
from jax.experimental.pallas import tpu as pltpu


# ----------------------------------------------------------------------------
# Kernels
# ----------------------------------------------------------------------------
def embed_onehot_kernel(ids_ref, table_ref, out_ref):
    # ids_ref: (NT, 1) int32; table_ref: (V, Hb) bf16; out_ref: (NT, Hb) bf16
    nt = ids_ref.shape[0]
    v = table_ref.shape[0]
    iota = lax.broadcasted_iota(jnp.int32, (nt, v), 1)
    onehot = (iota == ids_ref[...]).astype(jnp.bfloat16)
    out_ref[...] = jnp.dot(onehot, table_ref[...],
                           preferred_element_type=jnp.float32).astype(out_ref.dtype)


def _bilstm_core(x, mask, wih, whh, b, hseq_ref):
    """Fused bidirectional masked LSTM recurrence.

    x        : (B, T, D)  bf16/f32 values
    mask     : (B, T)     f32 values (1 = real, 0 = padded; right-padded sequences)
    wih      : (D, 8H)    bf16, columns [i_f,i_b, f_f,f_b, o_f,o_b, g_f,g_b]
    whh      : (2H, 8H)   bf16, block-diagonal, same column order, rows [h_fwd ; h_bwd]
    b        : (1, 8H)    f32 fused bias (b_ih + b_hh), same column order
    hseq_ref : (B, T, 2H) f32 VMEM scratch; filled with masked step outputs, forward half at
               time t and backward half at original time t (i.e. already un-reversed).
    """
    B, T, D = x.shape
    H8 = wih.shape[1]
    H = H8 // 8
    H2 = 2 * H

    # Hoisted input projection: one MXU matmul for all timesteps & both directions.
    gx = jnp.dot(x.reshape(B * T, D).astype(jnp.bfloat16), wih,
                 preferred_element_type=jnp.float32) + b
    gx = gx.reshape(B, T, H8)

    # Hoisted lane-position masks (which gate columns / state lanes belong to the fwd direction).
    gate_col = lax.broadcasted_iota(jnp.int32, (B, H8), 1)
    fwd_gate = (gate_col % H2) < H                               # (B, 8H) bool
    state_col = lax.broadcasted_iota(jnp.int32, (B, H2), 1)
    fwd_half = state_col < H                                     # (B, 2H) bool

    h = jnp.zeros((B, H2), jnp.float32)                          # fused state [h_fwd | h_bwd]
    c = jnp.zeros((B, H2), jnp.float32)

    # Statically unrolled recurrence (T is small); per step ONE (B,2H)x(2H,8H) MXU matmul.
    for t in range(T):
        tr = T - 1 - t
        # fwd gates read the hoisted projection at t, bwd gates at T-1-t (lane select, no concat)
        gin = jnp.where(fwd_gate, gx[:, t, :], gx[:, tr, :])
        gates = gin + jnp.dot(h.astype(jnp.bfloat16), whh,
                              preferred_element_type=jnp.float32)        # (B, 8H)
        sig = jax.nn.sigmoid(gates[:, 0:6 * H])                  # contiguous i,f,o gates
        g_g = jnp.tanh(gates[:, 6 * H:8 * H])
        i_g = sig[:, 0:H2]
        f_g = sig[:, H2:2 * H2]
        o_g = sig[:, 2 * H2:3 * H2]
        c_new = f_g * c + i_g * g_g
        h_new = o_g * jnp.tanh(c_new)
        # pack_padded_sequence semantics: frozen state / zero output at padded positions
        m_t = jnp.where(fwd_half, mask[:, t:t + 1], mask[:, tr:tr + 1])  # (B, 2H)
        h = m_t * h_new + (1.0 - m_t) * h
        c = m_t * c_new + (1.0 - m_t) * c
        out_step = m_t * h_new
        hseq_ref[:, t, 0:H] = out_step[:, 0:H]                   # forward half -> time t
        hseq_ref[:, tr, H:H2] = out_step[:, H:H2]                # backward half -> time T-1-t


def word_block_kernel(x_ref, mask_ref, wih_ref, whh_ref, b_ref,
                      aw1_ref, ab1_ref, aw2t_ref, out_ref, hseq_ref):
    """Word-level BiLSTM + attention pooling for ONE document (all its sentences).

    x_ref: (sents, toks, Hb) bf16   mask_ref: (1, sents, toks) f32
    out_ref: (1, sents, C*2H) bf16  hseq_ref: (sents, toks, 2H) f32 scratch
    """
    mask = mask_ref[0]                                           # (N, T)
    _bilstm_core(x_ref[...], mask, wih_ref[...], whh_ref[...], b_ref[...], hseq_ref)

    N, T, E = hseq_ref.shape
    C = aw2t_ref.shape[0]
    tok = hseq_ref[...]                                          # (N, T, E) f32
    # attention MLP: (N*T, E) x (E, U) on the MXU, tanh on the EUP
    a = jnp.tanh(jnp.dot(tok.reshape(N * T, E).astype(jnp.bfloat16), aw1_ref[...],
                         preferred_element_type=jnp.float32) + ab1_ref[...])
    a3 = a.reshape(N, T, a.shape[1])
    w2t = aw2t_ref[...].astype(jnp.float32)                      # (C, U)

    pooled = []
    for cls in range(C):                                         # static tiny loop
        # per-class scores with T on the lane axis: VPU multiply + lane reduce
        s = jnp.sum(a3 * w2t[cls:cls + 1, :], axis=-1)           # (N, T)
        # allennlp masked_softmax (memory_efficient=False) over the token axis
        sm = s * mask
        sm = sm - jnp.max(sm, axis=-1, keepdims=True)
        ex = jnp.exp(sm)
        p = ex * pl.reciprocal(jnp.sum(ex, axis=-1, keepdims=True), approx=True)
        p = p * mask
        p = p * pl.reciprocal(jnp.sum(p, axis=-1, keepdims=True) + 1e-13, approx=True)
        # weighted sum over tokens: VPU broadcast-multiply + sublane reduce
        pooled.append(jnp.sum(p[:, :, None] * tok, axis=1))      # (N, E)
    out_ref[0] = jnp.concatenate(pooled, axis=1).astype(out_ref.dtype)   # (N, C*E)


def sent_block_kernel(x_ref, mask_ref, wih_ref, whh_ref, b_ref,
                      wcls_ref, bcls_ref, out_ref, hseq_ref):
    """Sentence-level BiLSTM + classifier head for ONE document.

    x_ref: (1, sents, E_in) bf16   mask_ref: (1, 1, sents) f32
    out_ref: (1, sents, 128) f32   hseq_ref: (1, sents, 2H) f32 scratch
    """
    mask = mask_ref[0]                                           # (1, sents)
    _bilstm_core(x_ref[...], mask, wih_ref[...], whh_ref[...], b_ref[...], hseq_ref)

    B, S, H2 = hseq_ref.shape
    m = wcls_ref.shape[1]
    sent_enc = hseq_ref[...].reshape(B * S, H2)
    logits = jnp.dot(sent_enc.astype(jnp.bfloat16), wcls_ref[...],
                     preferred_element_type=jnp.float32) + bcls_ref[...]
    out_ref[...] = logits.reshape(B, S, m)


# ----------------------------------------------------------------------------
# Pallas wrappers
# ----------------------------------------------------------------------------
def embed_lookup(ids_flat, table_bf16):
    nt = ids_flat.shape[0]
    _, hb = table_bf16.shape
    return pl.pallas_call(
        embed_onehot_kernel,
        out_shape=jax.ShapeDtypeStruct((nt, hb), jnp.bfloat16),
    )(ids_flat.reshape(nt, 1).astype(jnp.int32), table_bf16)


def _full_spec(arr):
    return pl.BlockSpec(arr.shape, lambda d, _nd=arr.ndim: (0,) * _nd)


def word_encode_and_pool(x, attention_mask, lstm_p, att_p):
    """x: (docs*sents, toks, Hb) bf16; attention_mask: (docs, sents, toks) f32."""
    docs, sents, toks = attention_mask.shape
    hb = x.shape[-1]
    h2 = lstm_p['whh'].shape[0]
    c = att_p['w2t'].shape[0]
    grid_spec = pltpu.PrefetchScalarGridSpec(
        num_scalar_prefetch=0,
        grid=(docs,),
        in_specs=[pl.BlockSpec((sents, toks, hb), lambda d: (d, 0, 0)),
                  pl.BlockSpec((1, sents, toks), lambda d: (d, 0, 0)),
                  _full_spec(lstm_p['wih']), _full_spec(lstm_p['whh']), _full_spec(lstm_p['b']),
                  _full_spec(att_p['w1']), _full_spec(att_p['b1']), _full_spec(att_p['w2t'])],
        out_specs=pl.BlockSpec((1, sents, c * h2), lambda d: (d, 0, 0)),
        scratch_shapes=[pltpu.VMEM((sents, toks, h2), jnp.float32)],
    )
    return pl.pallas_call(
        word_block_kernel,
        out_shape=jax.ShapeDtypeStruct((docs, sents, c * h2), jnp.bfloat16),
        grid_spec=grid_spec,
        compiler_params=pltpu.CompilerParams(dimension_semantics=("parallel",)),
    )(x, attention_mask, lstm_p['wih'], lstm_p['whh'], lstm_p['b'],
      att_p['w1'], att_p['b1'], att_p['w2t'])


def sent_encode_and_classify(x, sentence_mask, lstm_p, w_cls, b_cls):
    """x: (docs, sents, E_in) bf16; sentence_mask: (docs, sents) f32."""
    docs, sents, e_in = x.shape
    h2 = lstm_p['whh'].shape[0]
    m = w_cls.shape[1]
    mask3 = sentence_mask.reshape(docs, 1, sents)
    grid_spec = pltpu.PrefetchScalarGridSpec(
        num_scalar_prefetch=0,
        grid=(docs,),
        in_specs=[pl.BlockSpec((1, sents, e_in), lambda d: (d, 0, 0)),
                  pl.BlockSpec((1, 1, sents), lambda d: (d, 0, 0)),
                  _full_spec(lstm_p['wih']), _full_spec(lstm_p['whh']), _full_spec(lstm_p['b']),
                  _full_spec(w_cls), _full_spec(b_cls)],
        out_specs=pl.BlockSpec((1, sents, m), lambda d: (d, 0, 0)),
        scratch_shapes=[pltpu.VMEM((1, sents, h2), jnp.float32)],
    )
    return pl.pallas_call(
        sent_block_kernel,
        out_shape=jax.ShapeDtypeStruct((docs, sents, m), jnp.float32),
        grid_spec=grid_spec,
        compiler_params=pltpu.CompilerParams(dimension_semantics=("parallel",)),
    )(x, mask3, lstm_p['wih'], lstm_p['whh'], lstm_p['b'], w_cls, b_cls)


# ----------------------------------------------------------------------------
# CRF Viterbi decode (plain JAX glue — tiny label-space DP)
# ----------------------------------------------------------------------------
def viterbi_decode(logits, mask, transitions, start_trans, end_trans):
    num_labels = logits.shape[-1]

    def per_doc(logit, m):
        alpha0 = logit[0] + start_trans

        def step(alpha, inp):
            logit_t, m_t = inp
            scores = alpha[:, None] + transitions + logit_t[None, :]
            new_alpha = jnp.max(scores, axis=0)
            bp = jnp.argmax(scores, axis=0)
            alpha_out = jnp.where(m_t > 0, new_alpha, alpha)
            bp_out = jnp.where(m_t > 0, bp, jnp.arange(num_labels))
            return alpha_out, bp_out

        alpha_final, bps = lax.scan(step, alpha0, (logit[1:], m[1:]))
        final = alpha_final + end_trans
        last_tag = jnp.argmax(final)

        def back(tag, bp):
            return bp[tag], tag

        first_tag, tags_rev = lax.scan(back, last_tag, bps[::-1])
        tags = jnp.concatenate([first_tag[None], tags_rev[::-1]])
        return jnp.where(m > 0, tags, 0)

    return jax.vmap(per_doc)(logits, mask)


# ----------------------------------------------------------------------------
# Parameters
# ----------------------------------------------------------------------------
def combine_bilstm_params(fwd, bwd, hidden):
    """Fused-direction weights with the gate interleave baked in at init.

    Column order is [i_f,i_b, f_f,f_b, o_f,o_b, g_f,g_b] (sigmoid gates contiguous, tanh gate
    last), so the hoisted input projection emits recurrence-ready gates and the per-step matmul
    output aligns with the fused [h_fwd | h_bwd] state without any in-kernel lane shuffles.
    Raw per-direction layout is the PyTorch nn.LSTM gate order (i, f, g, o).
    """
    h = hidden
    gate_order = (0, 1, 3, 2)                      # i, f, o, g
    zeros = jnp.zeros((h, h), jnp.float32)
    wih_cols, whh_cols, b_cols = [], [], []
    for g in gate_order:
        sl = slice(g * h, (g + 1) * h)
        wih_cols += [fwd['wih'][:, sl], bwd['wih'][:, sl]]
        b_cols += [fwd['b'][:, sl], bwd['b'][:, sl]]
        whh_cols += [jnp.concatenate([fwd['whh'][:, sl], zeros], axis=0),
                     jnp.concatenate([zeros, bwd['whh'][:, sl]], axis=0)]
    return {'wih': jnp.concatenate(wih_cols, axis=1).astype(jnp.bfloat16),
            'whh': jnp.concatenate(whh_cols, axis=1).astype(jnp.bfloat16),
            'b': jnp.concatenate(b_cols, axis=1).astype(jnp.float32)}


def init_params(key, vocab, bert_hidden, lstm_hidden, att_u, att_c, num_labels):
    ks = jax.random.split(key, 21)

    def nrm(k, shape, scale=0.1):
        return (scale * jax.random.normal(k, shape)).astype(jnp.float32)

    e = 2 * lstm_hidden
    att_out = att_c * e

    def raw_lstm(k0, k1, k2, in_dim):
        # PyTorch nn.LSTM gate order (i, f, g, o); fused bias corresponds to b_ih + b_hh.
        return {'wih': nrm(k0, (in_dim, 4 * lstm_hidden)),
                'whh': nrm(k1, (lstm_hidden, 4 * lstm_hidden)),
                'b': nrm(k2, (1, 4 * lstm_hidden))}

    word_lstm = combine_bilstm_params(raw_lstm(ks[1], ks[2], ks[3], bert_hidden),
                                      raw_lstm(ks[4], ks[5], ks[6], bert_hidden),
                                      lstm_hidden)
    sent_lstm = combine_bilstm_params(raw_lstm(ks[10], ks[11], ks[12], att_out),
                                      raw_lstm(ks[13], ks[14], ks[15], att_out),
                                      lstm_hidden)

    # classifier padded to 128 output lanes (sliced back to num_labels in the wrapper)
    w_cls = nrm(ks[16], (e, num_labels))
    b_cls = nrm(ks[17], (1, num_labels))
    lanes = 128
    w_pad = jnp.zeros((e, lanes), jnp.float32).at[:, :num_labels].set(w_cls).astype(jnp.bfloat16)
    b_pad = jnp.zeros((1, lanes), jnp.float32).at[:, :num_labels].set(b_cls)

    return {
        'embed': nrm(ks[0], (vocab, bert_hidden)).astype(jnp.bfloat16),
        'word_lstm': word_lstm,
        'att': {'w1': nrm(ks[7], (e, att_u)).astype(jnp.bfloat16),
                'b1': nrm(ks[8], (1, att_u)),
                'w2t': nrm(ks[9], (att_u, att_c)).T.astype(jnp.bfloat16)},   # (C, U)
        'sent_lstm': sent_lstm,
        'crf': {'w_pad': w_pad, 'b_pad': b_pad,
                'transitions': nrm(ks[18], (num_labels, num_labels)),
                'start': nrm(ks[19], (num_labels,)),
                'end': nrm(ks[20], (num_labels,))},
    }


# ----------------------------------------------------------------------------
# Forward pass
# ----------------------------------------------------------------------------
def bert_hsln_forward(params, batch):
    input_ids = batch['input_ids']
    attention_mask = batch['attention_mask'].astype(jnp.float32)     # (docs, sents, toks)
    sentence_mask = batch['sentence_mask'].astype(jnp.float32)       # (docs, sents)
    docs, sents, toks = input_ids.shape
    hb = params['embed'].shape[1]

    # "BERT" token embedder (synthetic table) — one-hot MXU gather, bf16 output
    ids_flat = input_ids.reshape(docs * sents * toks).astype(jnp.int32)
    emb = embed_lookup(ids_flat, params['embed'])                    # (docs*sents*toks, Hb) bf16
    bert_embeddings = emb.reshape(docs * sents, toks, hb)
    # dropout -> identity (inference)

    # word BiLSTM + attention pooling, fused; parallel grid over documents
    sent_emb = word_encode_and_pool(bert_embeddings, attention_mask,
                                    params['word_lstm'], params['att'])  # (docs,sents,C*2H) bf16
    # dropout -> identity (inference)

    # sentence BiLSTM + classifier head, fused; parallel grid over documents
    logits_pad = sent_encode_and_classify(sent_emb, sentence_mask, params['sent_lstm'],
                                          params['crf']['w_pad'], params['crf']['b_pad'])
    num_labels = params['crf']['transitions'].shape[0]
    logits = logits_pad[:, :, :num_labels]                           # (docs, sents, L)
    pred = viterbi_decode(logits, sentence_mask, params['crf']['transitions'],
                          params['crf']['start'], params['crf']['end'])
    return {'predicted_label': pred, 'logits': logits}


# ----------------------------------------------------------------------------
# PerTaskGroupWrapper (JAX analogue: tasks in a group share parameters)
# ----------------------------------------------------------------------------
class PerTaskGroupWrapper:
    def __init__(self, task_groups, create_params_func):
        self.task_groups = task_groups
        self.per_task_params = {}
        for g in task_groups:
            p = create_params_func(g)
            for t in g:
                self.per_task_params[t] = p

    def forward(self, task_name, *args):
        return bert_hsln_forward(self.per_task_params[task_name], *args)

    def to_device(self, device1, device2):
        self.task_to_device = {}
        for index, tasks in enumerate(self.task_groups):
            dev = device1 if index % 2 == 0 else device2
            moved = jax.device_put(self.per_task_params[tasks[0]], dev)
            for task in tasks:
                self.task_to_device[task] = dev
                self.per_task_params[task] = moved

    def get_device(self, task):
        return self.task_to_device[task]


# ----------------------------------------------------------------------------
# Main
# ----------------------------------------------------------------------------
if __name__ == "__main__":
    docs, sents, toks = 2, 4, 8
    vocab, bert_hidden, lstm_hidden = 50, 32, 16
    att_u, att_c, num_labels = 16, 2, 5

    key = jax.random.PRNGKey(0)
    kp, ki = jax.random.split(key)

    task_groups = [['task_A', 'task_B'], ['task_C']]
    group_keys = jax.random.split(kp, len(task_groups))
    key_by_group = {tuple(g): group_keys[i] for i, g in enumerate(task_groups)}

    def create_params(group):
        return init_params(key_by_group[tuple(group)], vocab, bert_hidden,
                           lstm_hidden, att_u, att_c, num_labels)

    wrapper = PerTaskGroupWrapper(task_groups, create_params)
    devs = jax.devices()
    wrapper.to_device(devs[0], devs[min(1, len(devs) - 1)])

    input_ids = jax.random.randint(ki, (docs, sents, toks), 0, vocab, dtype=jnp.int32)
    lengths = jnp.array([[8, 6, 8, 4], [8, 8, 5, 3]], dtype=jnp.int32)
    token_pos = jnp.arange(toks)[None, None, :]
    attention_mask = (token_pos < lengths[:, :, None]).astype(jnp.float32)
    sentence_mask = jnp.array([[1., 1., 1., 1.], [1., 1., 1., 0.]], dtype=jnp.float32)

    batch = {'input_ids': input_ids,
             'attention_mask': attention_mask,
             'sentence_mask': sentence_mask}

    out = wrapper.forward('task_A', batch)
    jax.block_until_ready(out['logits'])
    jax.block_until_ready(out['predicted_label'])
    print("KERNEL_OK")
</pallas_src>

<mosaic_0001>
module attributes {stable_mosaic.version = 11 : i64} {
  func.func @embed_onehot_kernel(%arg0: memref<64x1xi32, #tpu.memory_space<vmem>>, %arg1: memref<50x32xbf16, #tpu.memory_space<vmem>>, %arg2: memref<64x32xbf16, #tpu.memory_space<vmem>>) attributes {dimension_semantics = [], scalar_prefetch = 0 : i64, scratch_operands = 0 : i64, tpu.core_type = #tpu.core_type<tc>} {
    %0 = tpu.iota {dimensions = array<i32: 1>} : vector<64x50xi32>
    %c0 = arith.constant 0 : index
    %c0_0 = arith.constant 0 : index
    %1 = vector.load %arg0[%c0, %c0_0] : memref<64x1xi32, #tpu.memory_space<vmem>>, vector<64x1xi32>
    %2 = vector.broadcast %1 : vector<64x1xi32> to vector<64x50xi32>
    %3 = arith.cmpi eq, %0, %2 : vector<64x50xi32>
    %4 = arith.extui %3 : vector<64x50xi1> to vector<64x50xi32>
    %5 = arith.sitofp %4 : vector<64x50xi32> to vector<64x50xf32>
    %6 = arith.truncf %5 : vector<64x50xf32> to vector<64x50xbf16>
    %c0_1 = arith.constant 0 : index
    %c0_2 = arith.constant 0 : index
    %7 = vector.load %arg1[%c0_1, %c0_2] : memref<50x32xbf16, #tpu.memory_space<vmem>>, vector<50x32xbf16>
    %cst = arith.constant dense<0.000000e+00> : vector<64x32xf32>
    %8 = tpu.matmul %6, %7, %cst {dimension_numbers = #tpu.dot_dimension_numbers<[1], [0], [0], [1], [0, 0, 1, 1], [], []>} : vector<64x50xbf16>, vector<50x32xbf16>, vector<64x32xf32> -> vector<64x32xf32>
    %9 = arith.truncf %8 : vector<64x32xf32> to vector<64x32xbf16>
    %c0_3 = arith.constant 0 : index
    %c0_4 = arith.constant 0 : index
    %10 = vector.load %arg2[%c0_3, %c0_4] : memref<64x32xbf16, #tpu.memory_space<vmem>>, vector<64x32xbf16>
    tpu.vector_store %arg2[%c0_3, %c0_4], %9 {strides = array<i32>} : memref<64x32xbf16, #tpu.memory_space<vmem>>, vector<64x32xbf16>,
    return
  }
}

</mosaic_0001>

<llo_original>
// kernel: tpu_custom_call.1
$region0: #{tpu_custom_call.1}
  #allocation0 [shape = 'u32[]', space=smem, size = 0x4, offset = 0x4, fixed_abs, tag = 'smem constant byte address 0x4 - core index']
  #allocation1 [shape = 'u32[144,128]{1,0:T(1,128)}', space=vmem, size = 0x12000, scoped, tag = 'internal scratch']
  %s0 = inlined_call_operand.vmem [shape: s32[64,1], index: 0, kind: input, shape index: {}]
  %s1 = inlined_call_operand.vmem [shape: bf16[50,32], index: 1, kind: input, shape index: {}]
  %s2 = inlined_call_operand.vmem [shape: bf16[64,32], index: 2, kind: output, shape index: {}]
  %s3 = sld [smem:[#allocation0]]
  $region18: #{tpu_custom_call.1} parent=0
    _
  %s5 = ssub.s32 1, %s3
  %s6 = scalar_select 0, %s5, %s3
  // Predicated region
  $region2: #{tpu_custom_call.1} parent=0 // pred_check
    _
  $region3: #{tpu_custom_call.1} parent=0 // pred_check_branch
    %8 = sbr.rel (0) target = $region5
  $region4: #{tpu_custom_call.1} parent=0 // pred_region
    _
  $region5: #{tpu_custom_call.1} parent=0 // pred_fallthru
    _
  // Predicated region
  $region6: #{tpu_custom_call.1} parent=0 // pred_check
    _
  $region7: #{tpu_custom_call.1} parent=0 // pred_check_branch
    %10 = sbr.rel (0) target = $region9
  $region8: #{tpu_custom_call.1} parent=0 // pred_region
    _
  $region9: #{tpu_custom_call.1} parent=0 // pred_fallthru
    _
  %v12 = vlaneseq
  %v13 = vand.u32 %v12, 127
  %v14 = vld [vmem:[%s0] sm:$0xff]
  %v15 = vld [vmem:[%s0 + $0x8] sm:$0xff]
  %v16 = vld [vmem:[%s0 + $0x10] sm:$0xff]
  %v17 = vld [vmem:[%s0 + $0x18] sm:$0xff]
  %v18 = vld [vmem:[%s0 + $0x20] sm:$0xff]
  %v19 = vld [vmem:[%s0 + $0x28] sm:$0xff]
  %v20 = vld [vmem:[%s0 + $0x30] sm:$0xff]
  %v21 = vld [vmem:[%s0 + $0x38] sm:$0xff]
  %22 = vset.pattern.permute.xlu0 0
  %23 = vperm.xlu0 %22, %v14
  %v24 = vpop.permute.xlu0 %23
  %25 = vset.pattern.permute.xlu0 0
  %26 = vperm.xlu0 %25, %v15
  %v27 = vpop.permute.xlu0 %26
  %28 = vset.pattern.permute.xlu0 0
  %29 = vperm.xlu0 %28, %v16
  %v30 = vpop.permute.xlu0 %29
  %31 = vset.pattern.permute.xlu0 0
  %32 = vperm.xlu0 %31, %v17
  %v33 = vpop.permute.xlu0 %32
  %34 = vset.pattern.permute.xlu0 0
  %35 = vperm.xlu0 %34, %v18
  %v36 = vpop.permute.xlu0 %35
  %37 = vset.pattern.permute.xlu0 0
  %38 = vperm.xlu0 %37, %v19
  %v39 = vpop.permute.xlu0 %38
  %40 = vset.pattern.permute.xlu0 0
  %41 = vperm.xlu0 %40, %v20
  %v42 = vpop.permute.xlu0 %41
  %43 = vset.pattern.permute.xlu0 0
  %44 = vperm.xlu0 %43, %v21
  %v45 = vpop.permute.xlu0 %44
  %vm46 = vcmp.eq.s32.totalorder %v13, %v24
  %vm47 = vcmp.eq.s32.totalorder %v13, %v27
  %vm48 = vcmp.eq.s32.totalorder %v13, %v30
  %vm49 = vcmp.eq.s32.totalorder %v13, %v33
  %vm50 = vcmp.eq.s32.totalorder %v13, %v36
  %vm51 = vcmp.eq.s32.totalorder %v13, %v39
  %vm52 = vcmp.eq.s32.totalorder %v13, %v42
  %vm53 = vcmp.eq.s32.totalorder %v13, %v45
  %v54 = vsel %vm46, 1, 0
  %v55 = vsel %vm47, 1, 0
  %v56 = vsel %vm48, 1, 0
  %v57 = vsel %vm49, 1, 0
  %v58 = vsel %vm50, 1, 0
  %v59 = vsel %vm51, 1, 0
  %v60 = vsel %vm52, 1, 0
  %v61 = vsel %vm53, 1, 0
  %v62 = vcvt.s32.f32 %v54
  %v63 = vcvt.s32.f32 %v55
  %v64 = vcvt.s32.f32 %v56
  %v65 = vcvt.s32.f32 %v57
  %v66 = vcvt.s32.f32 %v58
  %v67 = vcvt.s32.f32 %v59
  %v68 = vcvt.s32.f32 %v60
  %v69 = vcvt.s32.f32 %v61
  %v70 = vpack.c.bf16 %v63, %v62
  %v71 = vpack.c.bf16 %v65, %v64
  %v72 = vpack.c.bf16 %v67, %v66
  %v73 = vpack.c.bf16 %v69, %v68
  %v74 = vld [vmem:[%s1] sm:$0xf]
  %v75 = vld [vmem:[%s1 + $0x4] sm:$0xf]
  %v76 = vld [vmem:[%s1 + $0x8] sm:$0xf]
  %v77 = vld [vmem:[%s1 + $0xc] sm:$0xf]
  %v78 = vld [vmem:[%s1 + $0x10] sm:$0xf]
  %v79 = vld [vmem:[%s1 + $0x14] sm:$0xf]
  %v80 = vld [vmem:[%s1 + $0x18] sm:$0x1]
  %v88 = vunpack.c.l.b16 %v74
  %v89 = vunpack.c.l.b16 %v75
  %v90 = vunpack.c.l.b16 %v76
  %v91 = vunpack.c.l.b16 %v77
  %v92 = vunpack.c.l.b16 %v78
  %v93 = vunpack.c.l.b16 %v79
  %v94 = vunpack.c.l.b16 %v80
  %v95 = vpack.c.b16 %v89, %v88
  %v96 = vpack.c.b16 %v91, %v90
  %v97 = vpack.c.b16 %v93, %v92
  %v98 = vpack.c.b16 %v94, %v94
  %vm102 = vcmask 408576
  %v104 = vsel %vm102, %v70, 0
  %v107 = vsel %vm102, %v71, 0
  %v110 = vsel %vm102, %v72, 0
  %v113 = vsel %vm102, %v73, 0
  %vm115 = vcmask 1040384
  %v117 = vsel %vm115, %v98, 0
  %119 = vmatprep.subr.bf16.mxu0 0
  %120 = vmatpush1.bf16.msra.mxu0 %v95
  %121 = vmatprep.subr.bf16.mxu0 0
  %122 = vmatpush1.bf16.msra.mxu0 %v96
  %123 = vmatprep.subr.bf16.mxu0 0
  %124 = vmatpush1.bf16.msra.mxu0 %v97
  %125 = vmatprep.subr.bf16.mxu0 0
  %126 = vmatpush1.bf16.msra.mxu0 %v117
  %127 = vmatprep.subr.bf16.mxu0 0
  %128 = vmatpush1.bf16.msra.mxu0 0
  %129 = vmatprep.subr.bf16.mxu0 0
  %130 = vmatpush1.bf16.msra.mxu0 0
  %131 = vmatprep.subr.bf16.mxu0 0
  %132 = vmatpush1.bf16.msra.mxu0 0
  %133 = vmatprep.subr.bf16.mxu0 0
  %134 = vmatpush1.bf16.msra.mxu0 0
  %135 = vmatprep.subr.bf16.mxu0 0
  %136 = vmatpush1.bf16.msra.mxu0 0
  %137 = vmatprep.subr.bf16.mxu0 0
  %138 = vmatpush1.bf16.msra.mxu0 0
  %139 = vmatprep.subr.bf16.mxu0 0
  %140 = vmatpush1.bf16.msra.mxu0 0
  %141 = vmatprep.subr.bf16.mxu0 0
  %142 = vmatpush1.bf16.msra.mxu0 0
  %143 = vmatprep.subr.bf16.mxu0 0
  %144 = vmatpush1.bf16.msra.mxu0 0
  %145 = vmatprep.subr.bf16.mxu0 0
  %146 = vmatpush1.bf16.msra.mxu0 0
  %147 = vmatprep.subr.bf16.mxu0 0
  %148 = vmatpush1.bf16.msra.mxu0 0
  %149 = vmatprep.subr.bf16.mxu0 0
  %150 = vmatpush1.bf16.msra.mxu0 0
  %151 = vmatprep.mubr.bf16.mxu0 0
  %152 = vmatmul.mubr.bf16.gmra.mrb[0].mxu0 %v104
  %v153 = vpop.f32.mrb[0].mxu0
  %v154 = vadd.f32 0.0, %v153
  %v155 = vpop.f32.mrb[0].mxu0
  %v156 = vpop.f32.mrb[0].mxu0
  %v157 = vadd.f32 0.0, %v156
  %v158 = vpop.f32.mrb[0].mxu0
  %159 = vmatprep.mubr.bf16.mxu0 0
  %160 = vmatmul.mubr.bf16.gmra.mrb[0].mxu0 %v107
  %v161 = vpop.f32.mrb[0].mxu0
  %v162 = vadd.f32 0.0, %v161
  %v163 = vpop.f32.mrb[0].mxu0
  %v164 = vpop.f32.mrb[0].mxu0
  %v165 = vadd.f32 0.0, %v164
  %v166 = vpop.f32.mrb[0].mxu0
  %167 = vmatprep.mubr.bf16.mxu0 0
  %168 = vmatmul.mubr.bf16.gmra.mrb[0].mxu0 %v110
  %v169 = vpop.f32.mrb[0].mxu0
  %v170 = vadd.f32 0.0, %v169
  %v171 = vpop.f32.mrb[0].mxu0
  %v172 = vpop.f32.mrb[0].mxu0
  %v173 = vadd.f32 0.0, %v172
  %v174 = vpop.f32.mrb[0].mxu0
  %175 = vmatprep.mubr.bf16.mxu0 0
  %176 = vmatmul.mubr.bf16.gmra.mrb[0].mxu0 %v113
  %v177 = vpop.f32.mrb[0].mxu0
  %v178 = vadd.f32 0.0, %v177
  %v179 = vpop.f32.mrb[0].mxu0
  %v180 = vpop.f32.mrb[0].mxu0
  %v181 = vadd.f32 0.0, %v180
  %v182 = vpop.f32.mrb[0].mxu0
  %183 = vdwg.mxu0
  %v184 = vpack.c.bf16 %v157, %v154
  %v185 = vpack.c.bf16 %v165, %v162
  %v186 = vpack.c.bf16 %v173, %v170
  %v187 = vpack.c.bf16 %v181, %v178
  %v192 = vunpack.c.l.b16 %v184
  %v193 = vunpack.c.h.b16 %v184
  %v194 = vunpack.c.l.b16 %v185
  %v195 = vunpack.c.h.b16 %v185
  %v196 = vunpack.c.l.b16 %v186
  %v197 = vunpack.c.h.b16 %v186
  %v198 = vunpack.c.l.b16 %v187
  %v199 = vunpack.c.h.b16 %v187
  %v200 = vpack.c.b16 %v192, %v192
  %v201 = vpack.c.b16 %v193, %v193
  %v202 = vpack.c.b16 %v194, %v194
  %v203 = vpack.c.b16 %v195, %v195
  %v204 = vpack.c.b16 %v196, %v196
  %v205 = vpack.c.b16 %v197, %v197
  %v206 = vpack.c.b16 %v198, %v198
  %v207 = vpack.c.b16 %v199, %v199
  %vm216 = vcmask 257024
  %217 = vst.msk [vmem:[%s2] sm:$0xf] %vm216, %v200
  %218 = vst.msk [vmem:[%s2 + $0x4] sm:$0xf] %vm216, %v201
  %219 = vst.msk [vmem:[%s2 + $0x8] sm:$0xf] %vm216, %v202
  %220 = vst.msk [vmem:[%s2 + $0xc] sm:$0xf] %vm216, %v203
  %221 = vst.msk [vmem:[%s2 + $0x10] sm:$0xf] %vm216, %v204
  %222 = vst.msk [vmem:[%s2 + $0x14] sm:$0xf] %vm216, %v205
  %223 = vst.msk [vmem:[%s2 + $0x18] sm:$0xf] %vm216, %v206
  %224 = vst.msk [vmem:[%s2 + $0x1c] sm:$0xf] %vm216, %v207
  // Predicated region
  $region10: #{tpu_custom_call.1} parent=0 // pred_check
    _
  $region11: #{tpu_custom_call.1} parent=0 // pred_check_branch
    %226 = sbr.rel (0) target = $region13
  $region12: #{tpu_custom_call.1} parent=0 // pred_region
    _
  $region13: #{tpu_custom_call.1} parent=0 // pred_fallthru
    _
  // Predicated region
  $region14: #{tpu_custom_call.1} parent=0 // pred_check
    _
  $region15: #{tpu_custom_call.1} parent=0 // pred_check_branch
    %228 = sbr.rel (0) target = $region17
  $region16: #{tpu_custom_call.1} parent=0 // pred_region
    _
  $region17: #{tpu_custom_call.1} parent=0 // pred_fallthru
    _

</llo_original>
